<compile_context>
chip_gen: v5e
topology: v5e:2x2
jax: 0.10.0
libtpu: 0.0.40
codegen_flags: <defaults>
</compile_context>

<pallas_src>
import functools

import jax
import jax.numpy as jnp
from jax import lax
from jax.experimental import pallas as pl
from jax.experimental.pallas import tpu as pltpu


def _nonlocal_kernel(x_ref, wqkv_ref, wm_ref, o_ref,
                     q_scr, k_scr, v_scr, acc_scr, *,
                     inter, tile_j, hw_valid, masked):
    """One (batch, key-tile) grid step.

    x_ref   : (C, HWp)  f32   input for this batch element (resident across j)
    wqkv_ref: (3I, C)   bf16  stacked [W_k; W_q; W_v] 1x1-conv weights
    wm_ref  : (C, I)    bf16  conv_mask 1x1-conv weight
    o_ref   : (C, HWp)  f32   output (written on the last j step only)
    q/k/v_scr: (I, HWp) bf16  projections, computed once per batch element
    acc_scr : (I, HWp)  f32   accumulator for sim_out^T
    """
    j = pl.program_id(1)
    n_j = pl.num_programs(1)

    @pl.when(j == 0)
    def _project():
        # Single fused projection matmul; store q/k/v once, already in bf16,
        # in three aligned scratches (no per-step recasts / offset slices).
        # NOTE: row order matches the PyTorch module: conv_k produces x_q and
        # conv_q produces x_k (intentional swap in the original code).
        x_bf = x_ref[...].astype(jnp.bfloat16)
        proj = jnp.dot(wqkv_ref[...], x_bf,
                       preferred_element_type=jnp.float32)        # (3I, HWp)
        q_scr[...] = proj[:inter, :].astype(jnp.bfloat16)
        k_scr[...] = proj[inter:2 * inter, :].astype(jnp.bfloat16)
        v_scr[...] = proj[2 * inter:, :].astype(jnp.bfloat16)

    j0 = pl.multiple_of(j * tile_j, tile_j)
    q_j = q_scr[:, pl.ds(j0, tile_j)]              # (I, TJ)  bf16
    v_j = v_scr[:, pl.ds(j0, tile_j)]              # (I, TJ)  bf16
    k_all = k_scr[...]                             # (I, HWp) bf16

    # simT[j, i] = torch sim[i, j]; the softmax-normalized index i stays on the
    # lane axis.  Contraction over dim 0 of both operands lowers to one MXU
    # matmul (compiles/runs clean); if a per-step vxpose of q_j ever shows up
    # in the bundle dump, switch to a pre-transposed q scratch.
    simT = lax.dot_general(q_j, k_all, (((0,), (0,)), ((), ())),
                           preferred_element_type=jnp.float32)    # (TJ, HWp)

    if masked:
        # Padded key columns (i >= hw) must not enter the softmax denominator.
        lane = lax.broadcasted_iota(jnp.int32, simT.shape, 1)
        simT = jnp.where(lane < hw_valid, simT, jnp.float32(-1e30))

    # nn.Softmax(dim=1): normalize over the x_k index i -> last (lane) axis.
    # The full i extent is present each step, so the softmax is exact here.
    m = jnp.max(simT, axis=-1, keepdims=True)
    e = jnp.exp(simT - m)
    inv = pl.reciprocal(jnp.sum(e, axis=-1, keepdims=True), approx=True)
    p_bf = (e * inv).astype(jnp.bfloat16)                         # (TJ, HWp)
    # TODO(synk): scaling v_j by 1/s instead of e would drop this (TJ, HWp)
    # multiply, but needs a (TJ,1)->(1,TJ) sublane->lane relayout; kept the
    # lane-broadcast form to stay on a known-good lowering path (the MXU is
    # the binding unit for inter >= 128 anyway).

    # sim_out^T[ic, i] += sum_{j in tile} v[ic, j] * attn[i, j]
    contrib = jnp.dot(v_j, p_bf, preferred_element_type=jnp.float32)  # (I, HWp)

    @pl.when(j == 0)
    def _first():
        acc_scr[...] = contrib          # assign: no zero-init store + extra add

    @pl.when(j > 0)
    def _rest():
        acc_scr[...] += contrib

    @pl.when(j == n_j - 1)
    def _finalize():
        mask_out = jnp.dot(wm_ref[...], acc_scr[...].astype(jnp.bfloat16),
                           preferred_element_type=jnp.float32)    # (C, HWp)
        o_ref[...] = (mask_out + x_ref[...]).astype(o_ref.dtype)


def _vmem_plan(c, inter, hw_pad):
    """VMEM- and HW-aware choice of the key tile and the scoped VMEM limit."""
    try:
        cap = int(getattr(pltpu.get_tpu_info(), "vmem_capacity_bytes", 0))
    except Exception:
        cap = 0
    if cap <= 0:
        cap = 64 << 20                          # conservative: v7x per-core VMEM
    # v5e/v6e (128 MiB physical) -> ~96 MiB scoped limit; v7x (64 MiB) -> 48 MiB.
    vmem_limit = max(32 << 20, min(100 << 20, (3 * cap) // 4))

    # Resident footprint: bf16 q/k/v + f32 acc scratch, double-buffered x/out
    # blocks, double-buffered (tiny) weights.
    resident = (3 * inter * hw_pad * 2
                + inter * hw_pad * 4
                + 2 * c * hw_pad * 4
                + 2 * c * hw_pad * 4
                + 2 * (4 * inter * c) * 2)

    def transient(tj):
        # f32 scores + f32 exp + bf16 p per (TJ, HWp) element, q/v tiles,
        # plus compiler headroom.
        return tj * hw_pad * 10 + 4 * inter * tj * 4 + (256 << 10)

    budget = int(vmem_limit * 0.85)
    n128 = hw_pad // 128
    tile = 128                                   # always divides hw_pad
    for kmul in range(1, n128 + 1):
        if n128 % kmul:
            continue
        t = 128 * kmul
        if t > 2048:
            break
        if resident + transient(t) <= budget:
            tile = t
    return tile, vmem_limit


def nonlocal_forward(x_nchw, w_k, w_q, w_v, w_mask):
    """x_nchw: (B, C, H, W); w_k/w_q/w_v: (I, C) with I = C // 2; w_mask: (C, I)."""
    b, c, h, w = x_nchw.shape
    hw = h * w
    inter = c // 2

    # Free reshape (no transpose): lane axis = HW, sublane axis = C.
    x2 = jnp.asarray(x_nchw, jnp.float32).reshape(b, c, hw)

    # Pad HW to a multiple of 128 lanes so all stores are unmasked vst; the
    # padded key columns are masked inside the kernel.
    hw_pad = ((hw + 127) // 128) * 128
    if hw_pad != hw:
        x2 = jnp.pad(x2, ((0, 0), (0, 0), (0, hw_pad - hw)))

    # Fuse the projection weights; feed bf16 to the MXU (f32 accumulation).
    wqkv = jnp.concatenate(
        [jnp.asarray(w_k), jnp.asarray(w_q), jnp.asarray(w_v)], axis=0
    ).astype(jnp.bfloat16)                                  # (3I, C)
    wm = jnp.asarray(w_mask).astype(jnp.bfloat16)           # (C, I)

    tile_j, vmem_limit = _vmem_plan(c, inter, hw_pad)
    n_j = hw_pad // tile_j

    flops = int(b * (2 * 3 * inter * c * hw_pad        # fused qkv projection
                     + 4 * inter * hw_pad * hw_pad     # scores + attn @ V
                     + 2 * c * inter * hw_pad))        # conv_mask
    transcendentals = int(b * hw_pad * hw_pad)          # exp
    bytes_accessed = int(2 * b * c * hw_pad * 4 + (4 * inter * c) * 2)

    kernel = functools.partial(_nonlocal_kernel, inter=inter, tile_j=tile_j,
                               hw_valid=hw, masked=(hw_pad != hw))

    out2 = pl.pallas_call(
        kernel,
        out_shape=jax.ShapeDtypeStruct((b, c, hw_pad), jnp.float32),
        grid_spec=pltpu.PrefetchScalarGridSpec(
            num_scalar_prefetch=0,
            grid=(b, n_j),
            in_specs=[
                pl.BlockSpec((pl.Squeezed(), c, hw_pad), lambda bi, ji: (bi, 0, 0)),
                pl.BlockSpec((3 * inter, c), lambda bi, ji: (0, 0)),
                pl.BlockSpec((c, inter), lambda bi, ji: (0, 0)),
            ],
            out_specs=pl.BlockSpec((pl.Squeezed(), c, hw_pad),
                                   lambda bi, ji: (bi, 0, 0)),
            scratch_shapes=[
                pltpu.VMEM((inter, hw_pad), jnp.bfloat16),   # q projection
                pltpu.VMEM((inter, hw_pad), jnp.bfloat16),   # k projection
                pltpu.VMEM((inter, hw_pad), jnp.bfloat16),   # v projection
                pltpu.VMEM((inter, hw_pad), jnp.float32),    # sim_out^T accumulator
            ],
        ),
        compiler_params=pltpu.CompilerParams(
            dimension_semantics=("parallel", "arbitrary"),
            vmem_limit_bytes=vmem_limit,
        ),
        cost_estimate=pl.CostEstimate(
            flops=flops,
            transcendentals=transcendentals,
            bytes_accessed=bytes_accessed,
        ),
    )(x2, wqkv, wm)

    if hw_pad != hw:
        out2 = out2[:, :, :hw]
    return out2.reshape(b, c, h, w)


def _reference(x, w_k, w_q, w_v, w_mask):
    """Pure-JAX transcription of the PyTorch forward (NCHW, f32)."""
    b, c, h, w = x.shape
    hw = h * w
    x_q = jnp.einsum('oc,bchw->bohw', w_k, x).reshape(b, -1, hw)                     # (b, I, hw)
    x_k = jnp.einsum('oc,bchw->bohw', w_q, x).reshape(b, -1, hw).transpose(0, 2, 1)  # (b, hw, I)
    x_v = jnp.einsum('oc,bchw->bohw', w_v, x).reshape(b, -1, hw).transpose(0, 2, 1)  # (b, hw, I)
    sim = jnp.matmul(x_k, x_q)                                                       # (b, hw, hw)
    sim = jax.nn.softmax(sim, axis=1)
    sim_out = jnp.matmul(sim, x_v).transpose(0, 2, 1)                                # (b, I, hw)
    mask = jnp.einsum('oc,bcp->bop', w_mask, sim_out).reshape(b, c, h, w)
    return mask + x


if __name__ == "__main__":
    key = jax.random.PRNGKey(0)
    k_x, k_k, k_q, k_v, k_m = jax.random.split(key, 5)

    B, C, H, W = 2, 4, 16, 16
    INTER = C // 2

    x = jax.random.normal(k_x, (B, C, H, W), dtype=jnp.float32)
    # 1x1 conv weights (kernel dims squeezed): conv_* are (I, C), conv_mask is (C, I)
    w_k = 0.1 * jax.random.normal(k_k, (INTER, C), dtype=jnp.float32)
    w_q = 0.1 * jax.random.normal(k_q, (INTER, C), dtype=jnp.float32)
    w_v = 0.1 * jax.random.normal(k_v, (INTER, C), dtype=jnp.float32)
    w_m = 0.1 * jax.random.normal(k_m, (C, INTER), dtype=jnp.float32)

    out = nonlocal_forward(x, w_k, w_q, w_v, w_m)
    out = jax.block_until_ready(out)

    ref = _reference(x, w_k, w_q, w_v, w_m)
    assert out.shape == (B, C, H, W)
    # bf16 MXU operands + approx-reciprocal softmax -> slightly looser tolerance
    # than pure f32 (accumulation and softmax math stay in f32).
    assert jnp.allclose(out, ref, atol=2e-3, rtol=2e-3), "mismatch vs reference"

    print("KERNEL_OK")
</pallas_src>

<mosaic_0001>
module attributes {stable_mosaic.version = 11 : i64} {
  func.func @_nonlocal_kernel(%arg0: i32, %arg1: i32, %arg2: memref<1x4x256xf32, #tpu.memory_space<vmem>>, %arg3: memref<6x4xbf16, #tpu.memory_space<vmem>>, %arg4: memref<4x2xbf16, #tpu.memory_space<vmem>>, %arg5: memref<1x4x256xf32, #tpu.memory_space<vmem>>, %arg6: memref<2x256xbf16, #tpu.memory_space<vmem>>, %arg7: memref<2x256xbf16, #tpu.memory_space<vmem>>, %arg8: memref<2x256xbf16, #tpu.memory_space<vmem>>, %arg9: memref<2x256xf32, #tpu.memory_space<vmem>>) attributes {dimension_semantics = [#tpu.dimension_semantics<parallel>, #tpu.dimension_semantics<arbitrary>], iteration_bounds = array<i64: 2, 1>, scalar_prefetch = 0 : i64, scratch_operands = 4 : i64, tpu.core_type = #tpu.core_type<tc>, window_params = [{transform_indices = @transform_0, window_bounds = array<i64: 1, 4, 256>}, {pipeline_mode = #tpu.pipeline_mode<synchronous>, transform_indices = @transform_1, window_bounds = array<i64: 6, 4>}, {pipeline_mode = #tpu.pipeline_mode<synchronous>, transform_indices = @transform_2, window_bounds = array<i64: 4, 2>}, {transform_indices = @transform_3, window_bounds = array<i64: 1, 4, 256>}]} {
    %c0_i32 = arith.constant 0 : i32
    %0 = arith.cmpi eq, %arg1, %c0_i32 : i32
    %1 = arith.extui %0 : i1 to i32
    %c0_i32_0 = arith.constant 0 : i32
    %2 = arith.cmpi ne, %1, %c0_i32_0 : i32
    scf.if %2 {
      %c0_13 = arith.constant 0 : index
      %c0_14 = arith.constant 0 : index
      %c0_15 = arith.constant 0 : index
      %32 = vector.load %arg2[%c0_13, %c0_14, %c0_15] : memref<1x4x256xf32, #tpu.memory_space<vmem>>, vector<1x4x256xf32>
      %33 = vector.shape_cast %32 : vector<1x4x256xf32> to vector<4x256xf32>
      %34 = arith.truncf %33 : vector<4x256xf32> to vector<4x256xbf16>
      %c0_16 = arith.constant 0 : index
      %c0_17 = arith.constant 0 : index
      %35 = vector.load %arg3[%c0_16, %c0_17] : memref<6x4xbf16, #tpu.memory_space<vmem>>, vector<6x4xbf16>
      %cst_18 = arith.constant dense<0.000000e+00> : vector<6x256xf32>
      %36 = tpu.matmul %35, %34, %cst_18 {dimension_numbers = #tpu.dot_dimension_numbers<[1], [0], [0], [1], [0, 0, 1, 1], [], []>} : vector<6x4xbf16>, vector<4x256xbf16>, vector<6x256xf32> -> vector<6x256xf32>
      %37 = vector.extract_strided_slice %36 {offsets = [0, 0], sizes = [2, 256], strides = [1, 1]} : vector<6x256xf32> to vector<2x256xf32>
      %38 = arith.truncf %37 : vector<2x256xf32> to vector<2x256xbf16>
      %c0_19 = arith.constant 0 : index
      %c0_20 = arith.constant 0 : index
      %39 = vector.load %arg6[%c0_19, %c0_20] : memref<2x256xbf16, #tpu.memory_space<vmem>>, vector<2x256xbf16>
      tpu.vector_store %arg6[%c0_19, %c0_20], %38 {strides = array<i32>} : memref<2x256xbf16, #tpu.memory_space<vmem>>, vector<2x256xbf16>,
      %40 = vector.extract_strided_slice %36 {offsets = [2, 0], sizes = [2, 256], strides = [1, 1]} : vector<6x256xf32> to vector<2x256xf32>
      %41 = arith.truncf %40 : vector<2x256xf32> to vector<2x256xbf16>
      %c0_21 = arith.constant 0 : index
      %c0_22 = arith.constant 0 : index
      %42 = vector.load %arg7[%c0_21, %c0_22] : memref<2x256xbf16, #tpu.memory_space<vmem>>, vector<2x256xbf16>
      tpu.vector_store %arg7[%c0_21, %c0_22], %41 {strides = array<i32>} : memref<2x256xbf16, #tpu.memory_space<vmem>>, vector<2x256xbf16>,
      %43 = vector.extract_strided_slice %36 {offsets = [4, 0], sizes = [2, 256], strides = [1, 1]} : vector<6x256xf32> to vector<2x256xf32>
      %44 = arith.truncf %43 : vector<2x256xf32> to vector<2x256xbf16>
      %c0_23 = arith.constant 0 : index
      %c0_24 = arith.constant 0 : index
      %45 = vector.load %arg8[%c0_23, %c0_24] : memref<2x256xbf16, #tpu.memory_space<vmem>>, vector<2x256xbf16>
      tpu.vector_store %arg8[%c0_23, %c0_24], %44 {strides = array<i32>} : memref<2x256xbf16, #tpu.memory_space<vmem>>, vector<2x256xbf16>,
    } else {
    }
    %c256_i32 = arith.constant 256 : i32
    %3 = arith.muli %arg1, %c256_i32 : i32
    %4 = tpu.assume_multiple %3, 256 : i32
    %c0 = arith.constant 0 : index
    %5 = arith.index_cast %4 : i32 to index
    %6 = vector.load %arg6[%c0, %5] : memref<2x256xbf16, #tpu.memory_space<vmem>>, vector<2x256xbf16>
    %c0_1 = arith.constant 0 : index
    %7 = arith.index_cast %4 : i32 to index
    %8 = vector.load %arg8[%c0_1, %7] : memref<2x256xbf16, #tpu.memory_space<vmem>>, vector<2x256xbf16>
    %c0_2 = arith.constant 0 : index
    %c0_3 = arith.constant 0 : index
    %9 = vector.load %arg7[%c0_2, %c0_3] : memref<2x256xbf16, #tpu.memory_space<vmem>>, vector<2x256xbf16>
    %cst = arith.constant dense<0.000000e+00> : vector<256x256xf32>
    %10 = tpu.matmul %6, %9, %cst {dimension_numbers = #tpu.dot_dimension_numbers<[0], [0], [1], [1], [0, 1, 1, 1], [], []>} : vector<2x256xbf16>, vector<2x256xbf16>, vector<256x256xf32> -> vector<256x256xf32>
    %cst_4 = arith.constant dense<0xFF800000> : vector<256xf32>
    %11 = vector.multi_reduction <maximumf>, %10, %cst_4 [1] : vector<256x256xf32> to vector<256xf32>
    %12 = vector.shape_cast %11 : vector<256xf32> to vector<256x1xf32>
    %13 = vector.broadcast %12 : vector<256x1xf32> to vector<256x256xf32>
    %14 = arith.subf %10, %13 : vector<256x256xf32>
    %15 = math.exp %14 : vector<256x256xf32>
    %cst_5 = arith.constant dense<0.000000e+00> : vector<256xf32>
    %16 = vector.multi_reduction <add>, %15, %cst_5 [1] : vector<256x256xf32> to vector<256xf32>
    %17 = vector.shape_cast %16 : vector<256xf32> to vector<256x1xf32>
    %18 = tpu.reciprocal %17 {approx = true} : vector<256x1xf32> -> vector<256x1xf32>
    %19 = vector.broadcast %18 : vector<256x1xf32> to vector<256x256xf32>
    %20 = arith.mulf %15, %19 : vector<256x256xf32>
    %21 = arith.truncf %20 : vector<256x256xf32> to vector<256x256xbf16>
    %cst_6 = arith.constant dense<0.000000e+00> : vector<2x256xf32>
    %22 = tpu.matmul %8, %21, %cst_6 {dimension_numbers = #tpu.dot_dimension_numbers<[1], [0], [0], [1], [0, 0, 1, 1], [], []>} : vector<2x256xbf16>, vector<256x256xbf16>, vector<2x256xf32> -> vector<2x256xf32>
    %c0_i32_7 = arith.constant 0 : i32
    %23 = arith.cmpi eq, %arg1, %c0_i32_7 : i32
    %24 = arith.extui %23 : i1 to i32
    %c0_i32_8 = arith.constant 0 : i32
    %25 = arith.cmpi ne, %24, %c0_i32_8 : i32
    scf.if %25 {
      %c0_13 = arith.constant 0 : index
      %c0_14 = arith.constant 0 : index
      %32 = vector.load %arg9[%c0_13, %c0_14] : memref<2x256xf32, #tpu.memory_space<vmem>>, vector<2x256xf32>
      tpu.vector_store %arg9[%c0_13, %c0_14], %22 {strides = array<i32>} : memref<2x256xf32, #tpu.memory_space<vmem>>, vector<2x256xf32>,
    } else {
    }
    %c0_i32_9 = arith.constant 0 : i32
    %26 = arith.cmpi sgt, %arg1, %c0_i32_9 : i32
    %27 = arith.extui %26 : i1 to i32
    %c0_i32_10 = arith.constant 0 : i32
    %28 = arith.cmpi ne, %27, %c0_i32_10 : i32
    scf.if %28 {
      %c0_13 = arith.constant 0 : index
      %c0_14 = arith.constant 0 : index
      %32 = vector.load %arg9[%c0_13, %c0_14] : memref<2x256xf32, #tpu.memory_space<vmem>>, vector<2x256xf32>
      %33 = arith.addf %32, %22 : vector<2x256xf32>
      %c0_15 = arith.constant 0 : index
      %c0_16 = arith.constant 0 : index
      %34 = vector.load %arg9[%c0_15, %c0_16] : memref<2x256xf32, #tpu.memory_space<vmem>>, vector<2x256xf32>
      tpu.vector_store %arg9[%c0_15, %c0_16], %33 {strides = array<i32>} : memref<2x256xf32, #tpu.memory_space<vmem>>, vector<2x256xf32>,
    } else {
    }
    %c0_i32_11 = arith.constant 0 : i32
    %29 = arith.cmpi eq, %arg1, %c0_i32_11 : i32
    %30 = arith.extui %29 : i1 to i32
    %c0_i32_12 = arith.constant 0 : i32
    %31 = arith.cmpi ne, %30, %c0_i32_12 : i32
    scf.if %31 {
      %c0_13 = arith.constant 0 : index
      %c0_14 = arith.constant 0 : index
      %32 = vector.load %arg4[%c0_13, %c0_14] : memref<4x2xbf16, #tpu.memory_space<vmem>>, vector<4x2xbf16>
      %c0_15 = arith.constant 0 : index
      %c0_16 = arith.constant 0 : index
      %33 = vector.load %arg9[%c0_15, %c0_16] : memref<2x256xf32, #tpu.memory_space<vmem>>, vector<2x256xf32>
      %34 = arith.truncf %33 : vector<2x256xf32> to vector<2x256xbf16>
      %cst_17 = arith.constant dense<0.000000e+00> : vector<4x256xf32>
      %35 = tpu.matmul %32, %34, %cst_17 {dimension_numbers = #tpu.dot_dimension_numbers<[1], [0], [0], [1], [0, 0, 1, 1], [], []>} : vector<4x2xbf16>, vector<2x256xbf16>, vector<4x256xf32> -> vector<4x256xf32>
      %c0_18 = arith.constant 0 : index
      %c0_19 = arith.constant 0 : index
      %c0_20 = arith.constant 0 : index
      %36 = vector.load %arg2[%c0_18, %c0_19, %c0_20] : memref<1x4x256xf32, #tpu.memory_space<vmem>>, vector<1x4x256xf32>
      %37 = vector.shape_cast %36 : vector<1x4x256xf32> to vector<4x256xf32>
      %38 = arith.addf %35, %37 : vector<4x256xf32>
      %c0_21 = arith.constant 0 : index
      %c0_22 = arith.constant 0 : index
      %c0_23 = arith.constant 0 : index
      %39 = vector.load %arg5[%c0_21, %c0_22, %c0_23] : memref<1x4x256xf32, #tpu.memory_space<vmem>>, vector<1x4x256xf32>
      %40 = vector.shape_cast %39 : vector<1x4x256xf32> to vector<4x256xf32>
      %41 = vector.shape_cast %38 : vector<4x256xf32> to vector<1x4x256xf32>
      tpu.vector_store %arg5[%c0_21, %c0_22, %c0_23], %41 {strides = array<i32>} : memref<1x4x256xf32, #tpu.memory_space<vmem>>, vector<1x4x256xf32>,
    } else {
    }
    return
  }
  func.func @transform_0(%arg0: i32, %arg1: i32) -> (i32, i32, i32) {
    %c0_i32 = arith.constant 0 : i32
    %c0_i32_0 = arith.constant 0 : i32
    %c0_i32_1 = arith.constant 0 : i32
    return %arg0, %c0_i32, %c0_i32_0 : i32, i32, i32
  }
  func.func @transform_1(%arg0: i32, %arg1: i32) -> (i32, i32) {
    %c0_i32 = arith.constant 0 : i32
    %c0_i32_0 = arith.constant 0 : i32
    %c0_i32_1 = arith.constant 0 : i32
    return %c0_i32, %c0_i32_0 : i32, i32
  }
  func.func @transform_2(%arg0: i32, %arg1: i32) -> (i32, i32) {
    %c0_i32 = arith.constant 0 : i32
    %c0_i32_0 = arith.constant 0 : i32
    %c0_i32_1 = arith.constant 0 : i32
    return %c0_i32, %c0_i32_0 : i32, i32
  }
  func.func @transform_3(%arg0: i32, %arg1: i32) -> (i32, i32, i32) {
    %c0_i32 = arith.constant 0 : i32
    %c0_i32_0 = arith.constant 0 : i32
    %c0_i32_1 = arith.constant 0 : i32
    return %arg0, %c0_i32, %c0_i32_0 : i32, i32, i32
  }
}

</mosaic_0001>

<llo_original>
// kernel: tpu_custom_call.1
$region0: #{tpu_custom_call.1}
  #allocation0 [shape = 'u32[]', space=smem, size = 0x4, offset = 0x4, fixed_abs, tag = 'smem constant byte address 0x4 - core index']
  #allocation1 [shape = 'u32[72,128]{1,0:T(1,128)}', space=vmem, size = 0x9000, scoped, tag = 'internal scratch']
  #allocation2 [shape = 'bf16[2,256]{1,0:T(2,128)(2,1)}', space=vmem, size = 0x400, scoped, tag = 'scratch operand']
  #allocation3 [shape = 'bf16[2,256]{1,0:T(2,128)(2,1)}', space=vmem, size = 0x400, scoped, tag = 'scratch operand']
  #allocation4 [shape = 'bf16[2,256]{1,0:T(2,128)(2,1)}', space=vmem, size = 0x400, scoped, tag = 'scratch operand']
  #allocation5 [shape = 'f32[2,256]{1,0:T(2,128)}', space=vmem, size = 0x800, scoped, tag = 'scratch operand']
  %s0 = inlined_call_operand.hbm [shape: f32[2,4,256], index: 0, kind: input, shape index: {}]
  %s1 = inlined_call_operand.vmem [shape: bf16[6,4], index: 1, kind: input, shape index: {}]
  %s2 = inlined_call_operand.vmem [shape: bf16[4,2], index: 2, kind: input, shape index: {}]
  %s3 = inlined_call_operand.hbm [shape: f32[2,4,256], index: 3, kind: output, shape index: {}]
  %s4 = sld [smem:[#allocation0]]
  $region65: #{tpu_custom_call.1} parent=0
    _
  %s6 = ssub.s32 1, %s4
  %s7 = scalar_select 0, %s6, %s4
  $region1: #{tpu_custom_call.1} parent=0
    #allocation6 [shape = 'u8[8192]{0}', space=vmem, size = 0x2000, scoped, tag = 'input window, operand 0']
    #allocation7 [shape = 's32[2]{0}', space=sflag, size = 0x8, scoped, tag = 'scoped memory for tpu_custom_call.1']
    #allocation8 [shape = 's32[2]{0}', space=sflag, size = 0x8, scoped, tag = 'scoped memory for tpu_custom_call.1']
    #allocation9 [shape = 'u8[8192]{0}', space=vmem, size = 0x2000, scoped, tag = 'output window, operand 0']
    %8 = vsyncpa [#allocation7], 0
    %s9 = scalar_lea.sflag [#allocation7], 1
    %10 = vsyncpa %s9, 0
    %11 = vsyncpa [#allocation8], 0
    %s12 = scalar_lea.sflag [#allocation8], 1
    %13 = vsyncpa %s12, 0
    loop: start=0, step=1, limit=4
    $region2: #{tpu_custom_call.1} parent=1 // loop_pre_header
      _
    $region3: #{tpu_custom_call.1} parent=1 // loop_header
      %s15 = sphi 0, %s19
      %p16 = scmp.ge.s32.totalorder %s15, 4
      %s22 = sphi 0, %s34
      %s23 = sphi 0, %s30
      %s24 = sphi 0, %s22
      %s25 = sphi 0, %s23
      %s26 = sphi 0, %s24
      %s27 = sphi 0, %s25
      %s37 = sphi 0, %s39
      %s40 = sphi 0, %s37
      %s41 = sphi 0, %s40
      %s57 = sphi 0, %s41
      %s61 = sphi 0, %s61
      %s63 = sphi 0, %s61
      %s64 = sphi 0, %s63
      %s78 = sphi 0, %s64
      %s82 = sphi 0, %s82
      %s84 = sphi 0, %s82
      %s85 = sphi 0, %s84
      %s99 = sphi 0, %s85
      %s105 = sphi 0, %s107
      %s108 = sphi 0, %s105
      %s109 = sphi 0, %s108
      %s125 = sphi 0, %s109
    $region4: #{tpu_custom_call.1} parent=1 // loop_header_branch
      %18 = sbr.rel (%p16) target = $region8
    $region5: #{tpu_custom_call.1} parent=1 // loop_body
      %s20 = ssub.s32 %s15, 1
      %s21 = ssub.s32 %s15, 2
      %s28 = sadd.s32 1, %s23
      %p29 = scmp.ge.s32.totalorder %s28, 1
      %s30 = scalar_select %p29, 0, %s28
      %s31 = sadd.s32 1, %s22
      %s32 = scalar_select %p29, %s31, %s22
      %p33 = scmp.ge.s32.totalorder %s32, 2
      %s34 = scalar_select %p33, 0, %s32
      %s35 = ssub.s32 %s22, %s34
      %p36 = scmp.eq.s32.totalorder %s35, 0
      %s38 = sadd.s32 %s37, 1
      %s39 = scalar_select %p36, %s37, %s38
      %p42 = pneg %p36
      %p43 = scmp.eq.s32.totalorder %s15, 1
      %p44 = por %p42, %p43
      %p45 = scmp.ne.s32.totalorder %s37, %s40
      %p46 = scmp.eq.s32.totalorder %s15, 0
      %p47 = por %p45, %p46
      %p48 = scmp.ne.s32.totalorder %s37, %s40
      %p49 = scmp.eq.s32.totalorder %s20, 1
      %p50 = por %p48, %p49
      %p51 = scmp.ne.s32.totalorder %s40, %s41
      %p52 = scmp.eq.s32.totalorder %s20, 0
      %p53 = por %p51, %p52
      %p54 = scmp.ne.s32.totalorder %s40, %s41
      %p55 = scmp.eq.s32.totalorder %s21, 1
      %p56 = por %p54, %p55
      %p58 = scmp.ne.s32.totalorder %s41, %s57
      %p59 = scmp.eq.s32.totalorder %s21, 0
      %p60 = por %p58, %p59
      %s62 = sadd.s32 %s61, 1
      %p65 = scmp.eq.s32.totalorder %s15, 1
      %p66 = scmp.ne.s32.totalorder %s61, %s63
      %p67 = scmp.eq.s32.totalorder %s15, 0
      %p68 = por %p66, %p67
      %p69 = scmp.ne.s32.totalorder %s61, %s63
      %p70 = scmp.eq.s32.totalorder %s20, 1
      %p71 = por %p69, %p70
      %p72 = scmp.ne.s32.totalorder %s63, %s64
      %p73 = scmp.eq.s32.totalorder %s20, 0
      %p74 = por %p72, %p73
      %p75 = scmp.ne.s32.totalorder %s63, %s64
      %p76 = scmp.eq.s32.totalorder %s21, 1
      %p77 = por %p75, %p76
      %p79 = scmp.ne.s32.totalorder %s64, %s78
      %p80 = scmp.eq.s32.totalorder %s21, 0
      %p81 = por %p79, %p80
      %s83 = sadd.s32 %s82, 1
      %p86 = scmp.eq.s32.totalorder %s15, 1
      %p87 = scmp.ne.s32.totalorder %s82, %s84
      %p88 = scmp.eq.s32.totalorder %s15, 0
      %p89 = por %p87, %p88
      %p90 = scmp.ne.s32.totalorder %s82, %s84
      %p91 = scmp.eq.s32.totalorder %s20, 1
      %p92 = por %p90, %p91
      %p93 = scmp.ne.s32.totalorder %s84, %s85
      %p94 = scmp.eq.s32.totalorder %s20, 0
      %p95 = por %p93, %p94
      %p96 = scmp.ne.s32.totalorder %s84, %s85
      %p97 = scmp.eq.s32.totalorder %s21, 1
      %p98 = por %p96, %p97
      %p100 = scmp.ne.s32.totalorder %s85, %s99
      %p101 = scmp.eq.s32.totalorder %s21, 0
      %p102 = por %p100, %p101
      %s103 = ssub.s32 %s22, %s34
      %p104 = scmp.eq.s32.totalorder %s103, 0
      %s106 = sadd.s32 %s105, 1
      %s107 = scalar_select %p104, %s105, %s106
      %p110 = pneg %p104
      %p111 = scmp.eq.s32.totalorder %s15, 1
      %p112 = por %p110, %p111
      %p113 = scmp.ne.s32.totalorder %s105, %s108
      %p114 = scmp.eq.s32.totalorder %s15, 0
      %p115 = por %p113, %p114
      %p116 = scmp.ne.s32.totalorder %s105, %s108
      %p117 = scmp.eq.s32.totalorder %s20, 1
      %p118 = por %p116, %p117
      %p119 = scmp.ne.s32.totalorder %s108, %s109
      %p120 = scmp.eq.s32.totalorder %s20, 0
      %p121 = por %p119, %p120
      %p122 = scmp.ne.s32.totalorder %s108, %s109
      %p123 = scmp.eq.s32.totalorder %s21, 1
      %p124 = por %p122, %p123
      %p126 = scmp.ne.s32.totalorder %s109, %s125
      %p127 = scmp.eq.s32.totalorder %s21, 0
      %p128 = por %p126, %p127
      %p129 = scmp.le.s32.totalorder 1, %s15
      %p130 = scmp.lt.s32.totalorder %s15, 3
      %p131 = pnand %p129, %p130
      %p132 = pneg %p131
      // Predicated region
      $region9: #{tpu_custom_call.1} parent=5 // pred_check
        _
      $region10: #{tpu_custom_call.1} parent=5 // pred_check_branch
        %134 = sbr.rel (%p131) target = $region12
      $region11: #{tpu_custom_call.1} parent=5 // pred_region
        %s135 = ssub.s32 %s15, 1
        // Predicated region
        $region13: #{tpu_custom_call.1} parent=11 // pred_check
          %p136 = pneg %p74
        $region14: #{tpu_custom_call.1} parent=11 // pred_check_branch
          %138 = sbr.rel (%p136) target = $region16
        $region15: #{tpu_custom_call.1} parent=11 // pred_region
          _
        $region16: #{tpu_custom_call.1} parent=11 // pred_fallthru
          _
        // Predicated region
        $region17: #{tpu_custom_call.1} parent=11 // pred_check
          %p139 = pneg %p95
        $region18: #{tpu_custom_call.1} parent=11 // pred_check_branch
          %141 = sbr.rel (%p139) target = $region20
        $region19: #{tpu_custom_call.1} parent=11 // pred_region
          _
        $region20: #{tpu_custom_call.1} parent=11 // pred_fallthru
          _
      $region12: #{tpu_custom_call.1} parent=5 // pred_fallthru
        _
      %p142 = scmp.lt.s32.totalorder %s15, 2
      // Predicated region
      $region21: #{tpu_custom_call.1} parent=5 // pred_check
        %p143 = pneg %p142
      $region22: #{tpu_custom_call.1} parent=5 // pred_check_branch
        %145 = sbr.rel (%p143) target = $region24
      $region23: #{tpu_custom_call.1} parent=5 // pred_region
        // Predicated region
        $region25: #{tpu_custom_call.1} parent=23 // pred_check
          %p146 = pneg %p47
        $region26: #{tpu_custom_call.1} parent=23 // pred_check_branch
          %148 = sbr.rel (%p146) target = $region28
        $region27: #{tpu_custom_call.1} parent=23 // pred_region
          %s149 = sand.u32 %s37, 1
          %s150 = scalar_lea.sflag [#allocation7], %s149
          %s151 = sand.u32 %s37, 1
          %s152 = smul.addr %s151, 8
          %s153 = scalar_lea.vmem [#allocation6], %s152
          %155 = vsyncadd %s150, 0
          %s156 = smul.addr %s22, 2
          %s157 = smul.addr %s156, 4
          %s158 = scalar_lea.hbm %s0, %s157
          %s160 = sshll.u32 %s158, 4
          %s161 = int_to_ptr.hbm [resolvable:$true] %s160
          %s162 = sshll.u32 %s153, 4
          %s163 = int_to_ptr.vmem [resolvable:$true] %s162
          %165 = dma.hbm_to_vmem [thread:$0]  %s161, 128, %s163, %s150
        $region28: #{tpu_custom_call.1} parent=23 // pred_fallthru
          _
      $region24: #{tpu_custom_call.1} parent=5 // pred_fallthru
        _
      %p166 = scmp.le.s32.totalorder 1, %s15
      %p167 = scmp.lt.s32.totalorder %s15, 3
      %p168 = pnand %p166, %p167
      %p169 = pneg %p168
      // Predicated region
      $region29: #{tpu_custom_call.1} parent=5 // pred_check
        _
      $region30: #{tpu_custom_call.1} parent=5 // pred_check_branch
        %171 = sbr.rel (%p168) target = $region32
      $region31: #{tpu_custom_call.1} parent=5 // pred_region
        %s172 = ssub.s32 %s15, 1
        %s173 = sand.u32 %s40, 1
        %s174 = scalar_lea.sflag [#allocation7], %s173
        %s175 = sand.u32 %s40, 1
        %s176 = smul.addr %s175, 8
        %s177 = scalar_lea.vmem [#allocation6], %s176
        // Predicated region
        $region33: #{tpu_custom_call.1} parent=31 // pred_check
          %p178 = pneg %p53
        $region34: #{tpu_custom_call.1} parent=31 // pred_check_branch
          %180 = sbr.rel (%p178) target = $region36
        $region35: #{tpu_custom_call.1} parent=31 // pred_region
          %182 = dma.done %s174, 128
        $region36: #{tpu_custom_call.1} parent=31 // pred_fallthru
          _
        %s183 = sand.u32 %s40, 1
        %s184 = scalar_lea.sflag [#allocation7], %s183
        %s185 = sand.u32 %s40, 1
        %s186 = smul.addr %s185, 8
        %s187 = scalar_lea.vmem [#allocation6], %s186
        %p188 = pneg %p53
        %p189 = pneg %p50
        %p190 = pneg %p74
        %p191 = pneg %p71
        %p192 = pneg %p95
        %p193 = pneg %p92
        %p194 = pneg %p121
        %p195 = pneg %p118
        %s196 = sand.u32 %s108, 1
        %s197 = scalar_lea.sflag [#allocation8], %s196
        %s198 = sand.u32 %s108, 1
        %s199 = smul.addr %s198, 8
        %s200 = scalar_lea.vmem [#allocation9], %s199
        %p202 = scmp.eq.s32.totalorder %s25, 0
        // Predicated region
        $region37: #{tpu_custom_call.1} parent=31 // pred_check
          %p203 = pneg %p202
        $region38: #{tpu_custom_call.1} parent=31 // pred_check_branch
          %205 = sbr.rel (%p203) target = $region40
        $region39: #{tpu_custom_call.1} parent=31 // pred_region
          %v206 = vld [vmem:[%s177] sm:$0xff]
          %208 = vst [vmem:[#allocation1] ss:$2 sm:$0xff] %v206
          %v209 = vld.sshfl [vmem:[#allocation1] sm:$0xff pattern:$0x75316420]
          %v210 = vld.sshfl [vmem:[#allocation1 + $0x8] sm:$0xff pattern:$0x75316420]
          %v213 = vpack.c.bf16 %v209, %v209
          %v214 = vpack.c.bf16 %v210, %v210
          %v215 = vld [vmem:[%s1] sm:$0x7]
          %vm216 = vcmask 31744
          %v218 = vsel %vm216, %v215, 0
          %vm220 = vcmask 1041408
          %v222 = vsel %vm220, %v213, 0
          %v225 = vsel %vm220, %v214, 0
          %227 = vmatpush.bf16.msra.mxu0 0
          %228 = vmatpush.bf16.msra.mxu0 0
          %229 = vmatpush.bf16.msra.mxu0 0
          %230 = vmatpush.bf16.msra.mxu0 0
          %231 = vmatpush.bf16.msra.mxu0 0
          %232 = vmatpush.bf16.msra.mxu0 0
          %233 = vmatpush.bf16.msra.mxu0 0
          %234 = vmatpush.bf16.msra.mxu0 %v222
          %235 = vmatmul.bf16.gmra.mxu0 %v218
          %v236 = vpop.f32.mrf.mxu0
          %v237 = vadd.f32 0.0, %v236
          %v238 = vpop.f32.mrf.mxu0
          %239 = vdwg.mxu0
          %240 = vmatpush.bf16.msra.mxu0 0
          %241 = vmatpush.bf16.msra.mxu0 0
          %242 = vmatpush.bf16.msra.mxu0 0
          %243 = vmatpush.bf16.msra.mxu0 0
          %244 = vmatpush.bf16.msra.mxu0 0
          %245 = vmatpush.bf16.msra.mxu0 0
          %246 = vmatpush.bf16.msra.mxu0 0
          %247 = vmatpush.bf16.msra.mxu0 %v225
          %248 = vmatmul.bf16.gmra.mxu0 %v218
          %v249 = vpop.f32.mrf.mxu0
          %v250 = vadd.f32 0.0, %v249
          %v251 = vpop.f32.mrf.mxu0
          %252 = vdwg.mxu0
          %v253 = vpack.c.bf16 %v250, %v237
          %v255 = vrot.slane %v253, 3
          %vm256 = vcmask 1040384
          %v259 = vsel %vm256, %v253, %v255
          %261 = vst [vmem:[#allocation2] sm:$0x3] %v259
          %262 = vst [vmem:[#allocation1] sm:$0xff] %v253
          %s263 = scalar_lea.vmem [#allocation1], 1
          %v264 = vld [vmem:[%s263] ss:$4 sm:$0xff]
          %266 = vst [vmem:[#allocation3] sm:$0x3] %v264
          %267 = vst [vmem:[#allocation1] sm:$0xff] %v253
          %s268 = scalar_lea.vmem [#allocation1], 2
          %v269 = vld [vmem:[%s268] ss:$4 sm:$0xff]
          %271 = vst [vmem:[#allocation4] sm:$0x3] %v269
        $region40: #{tpu_custom_call.1} parent=31 // pred_fallthru
          _
        %s272 = smul.u32 %s25, 256
        %s273 = sshra.s32 %s272, 7
        %s274 = sand.u32 %s272, 127
        %s275 = scalar_lea.vmem [#allocation2], %s273
        %v276 = vld [vmem:[%s275] sm:$0x3]
        %s277 = scalar_lea.vmem [#allocation4], %s273
        %v278 = vld [vmem:[%s277] sm:$0x3]
        %v279 = vld [vmem:[#allocation3] sm:$0x3]
        %281 = vst [vmem:[#allocation1] ss:$9 sm:$0xff] %v276
        %v282 = vld [vmem:[#allocation1] sm:$0xff]
        %v283 = vld [vmem:[#allocation1 + $0x9] sm:$0xff]
        %286 = vxpose.binary.xlu0.c.b16.start [1/16] %v283, %v282, 128
        %287 = vxpose.binary.xlu0.c.b16.cont [2/16] 0, 0, 128
        %288 = vxpose.binary.xlu0.c.b16.cont [3/16] 0, 0, 128
        %289 = vxpose.binary.xlu0.c.b16.cont [4/16] 0, 0, 128
        %290 = vxpose.binary.xlu0.c.b16.cont [5/16] 0, 0, 128
        %291 = vxpose.binary.xlu0.c.b16.cont [6/16] 0, 0, 128
        %292 = vxpose.binary.xlu0.c.b16.cont [7/16] 0, 0, 128
        %293 = vxpose.binary.xlu0.c.b16.end [8/16] 0, 0, 128
        %v294 = vpop.trf.xlu0
        %v295 = vpop.trf.xlu0
        %v296 = vpop.trf.xlu0
        %v297 = vpop.trf.xlu0
        %v298 = vpop.trf.xlu0
        %v299 = vpop.trf.xlu0
        %v300 = vpop.trf.xlu0
        %v301 = vpop.trf.xlu0
        %v302 = vpop.trf.xlu0
        %v303 = vpop.trf.xlu0
        %v304 = vpop.trf.xlu0
        %v305 = vpop.trf.xlu0
        %v306 = vpop.trf.xlu0
        %v307 = vpop.trf.xlu0
        %v308 = vpop.trf.xlu0
        %v309 = vpop.trf.xlu0
        %311 = vst [vmem:[#allocation1] ss:$9 sm:$0xff] %v279
        %v312 = vld [vmem:[#allocation1] sm:$0xff]
        %v313 = vld [vmem:[#allocation1 + $0x9] sm:$0xff]
        %vm314 = vcmask 15360
        %v316 = vsel %vm314, %v294, 0
        %v319 = vsel %vm314, %v296, 0
        %v322 = vsel %vm314, %v298, 0
        %v325 = vsel %vm314, %v300, 0
        %v328 = vsel %vm314, %v302, 0
        %v331 = vsel %vm314, %v304, 0
        %v334 = vsel %vm314, %v306, 0
        %v337 = vsel %vm314, %v308, 0
        %v340 = vsel %vm314, %v295, 0
        %v343 = vsel %vm314, %v297, 0
        %v346 = vsel %vm314, %v299, 0
        %v349 = vsel %vm314, %v301, 0
        %v352 = vsel %vm314, %v303, 0
        %v355 = vsel %vm314, %v305, 0
        %v358 = vsel %vm314, %v307, 0
        %v361 = vsel %vm314, %v309, 0
        %vm363 = vcmask 1040384
        %v364 = vsel %vm363, %v312, 0
        %v366 = vsel %vm363, %v313, 0
        %368 = vmatpush.bf16.msra.mxu0 0
        %369 = vmatpush.bf16.msra.mxu0 0
        %370 = vmatpush.bf16.msra.mxu0 0
        %371 = vmatpush.bf16.msra.mxu0 0
        %372 = vmatpush.bf16.msra.mxu0 0
        %373 = vmatpush.bf16.msra.mxu0 0
        %374 = vmatpush.bf16.msra.mxu0 0
        %375 = vmatpush.bf16.msra.mxu0 %v364
        %376 = vmatmul.bf16.gmra.mxu0 %v316
        %v377 = vpop.f32.mrf.mxu0
        %v378 = vadd.f32 0.0, %v377
        %v379 = vpop.f32.mrf.mxu0
        %v380 = vadd.f32 0.0, %v379
        %381 = vmatmul.bf16.gmra.mxu0 %v319
        %v382 = vpop.f32.mrf.mxu0
        %v383 = vadd.f32 0.0, %v382
        %v384 = vpop.f32.mrf.mxu0
        %v385 = vadd.f32 0.0, %v384
        %386 = vmatmul.bf16.gmra.mxu0 %v322
        %v387 = vpop.f32.mrf.mxu0
        %v388 = vadd.f32 0.0, %v387
        %v389 = vpop.f32.mrf.mxu0
        %v390 = vadd.f32 0.0, %v389
        %391 = vmatmul.bf16.gmra.mxu0 %v325
        %v392 = vpop.f32.mrf.mxu0
        %v393 = vadd.f32 0.0, %v392
        %v394 = vpop.f32.mrf.mxu0
        %v395 = vadd.f32 0.0, %v394
        %396 = vmatmul.bf16.gmra.mxu0 %v328
        %v397 = vpop.f32.mrf.mxu0
        %v398 = vadd.f32 0.0, %v397
        %v399 = vpop.f32.mrf.mxu0
        %v400 = vadd.f32 0.0, %v399
        %401 = vmatmul.bf16.gmra.mxu0 %v331
        %v402 = vpop.f32.mrf.mxu0
        %v403 = vadd.f32 0.0, %v402
        %v404 = vpop.f32.mrf.mxu0
        %v405 = vadd.f32 0.0, %v404
        %406 = vmatmul.bf16.gmra.mxu0 %v334
        %v407 = vpop.f32.mrf.mxu0
        %v408 = vadd.f32 0.0, %v407
        %v409 = vpop.f32.mrf.mxu0
        %v410 = vadd.f32 0.0, %v409
        %411 = vmatmul.bf16.gmra.mxu0 %v337
        %v412 = vpop.f32.mrf.mxu0
        %v413 = vadd.f32 0.0, %v412
        %v414 = vpop.f32.mrf.mxu0
        %v415 = vadd.f32 0.0, %v414
        %416 = vmatmul.bf16.gmra.mxu0 %v340
        %v417 = vpop.f32.mrf.mxu0
        %v418 = vadd.f32 0.0, %v417
        %v419 = vpop.f32.mrf.mxu0
        %v420 = vadd.f32 0.0, %v419
        %421 = vmatmul.bf16.gmra.mxu0 %v343
        %v422 = vpop.f32.mrf.mxu0
        %v423 = vadd.f32 0.0, %v422
        %v424 = vpop.f32.mrf.mxu0
        %v425 = vadd.f32 0.0, %v424
        %426 = vmatmul.bf16.gmra.mxu0 %v346
        %v427 = vpop.f32.mrf.mxu0
        %v428 = vadd.f32 0.0, %v427
        %v429 = vpop.f32.mrf.mxu0
        %v430 = vadd.f32 0.0, %v429
        %431 = vmatmul.bf16.gmra.mxu0 %v349
        %v432 = vpop.f32.mrf.mxu0
        %v433 = vadd.f32 0.0, %v432
        %v434 = vpop.f32.mrf.mxu0
        %v435 = vadd.f32 0.0, %v434
        %436 = vmatmul.bf16.gmra.mxu0 %v352
        %v437 = vpop.f32.mrf.mxu0
        %v438 = vadd.f32 0.0, %v437
        %v439 = vpop.f32.mrf.mxu0
        %v440 = vadd.f32 0.0, %v439
        %441 = vmatmul.bf16.gmra.mxu0 %v355
        %v442 = vpop.f32.mrf.mxu0
        %v443 = vadd.f32 0.0, %v442
        %v444 = vpop.f32.mrf.mxu0
        %v445 = vadd.f32 0.0, %v444
        %446 = vmatmul.bf16.gmra.mxu0 %v358
        %v447 = vpop.f32.mrf.mxu0
        %v448 = vadd.f32 0.0, %v447
        %v449 = vpop.f32.mrf.mxu0
        %v450 = vadd.f32 0.0, %v449
        %451 = vmatmul.bf16.gmra.mxu0 %v361
        %v452 = vpop.f32.mrf.mxu0
        %v453 = vadd.f32 0.0, %v452
        %v454 = vpop.f32.mrf.mxu0
        %v455 = vadd.f32 0.0, %v454
        %456 = vdwg.mxu0
        %457 = vmatpush.bf16.msra.mxu0 0
        %458 = vmatpush.bf16.msra.mxu0 0
        %459 = vmatpush.bf16.msra.mxu0 0
        %460 = vmatpush.bf16.msra.mxu0 0
        %461 = vmatpush.bf16.msra.mxu0 0
        %462 = vmatpush.bf16.msra.mxu0 0
        %463 = vmatpush.bf16.msra.mxu0 0
        %464 = vmatpush.bf16.msra.mxu0 %v366
        %465 = vmatmul.bf16.gmra.mxu0 %v316
        %v466 = vpop.f32.mrf.mxu0
        %v467 = vadd.f32 0.0, %v466
        %v468 = vpop.f32.mrf.mxu0
        %v469 = vadd.f32 0.0, %v468
        %470 = vmatmul.bf16.gmra.mxu0 %v319
        %v471 = vpop.f32.mrf.mxu0
        %v472 = vadd.f32 0.0, %v471
        %v473 = vpop.f32.mrf.mxu0
        %v474 = vadd.f32 0.0, %v473
        %475 = vmatmul.bf16.gmra.mxu0 %v322
        %v476 = vpop.f32.mrf.mxu0
        %v477 = vadd.f32 0.0, %v476
        %v478 = vpop.f32.mrf.mxu0
        %v479 = vadd.f32 0.0, %v478
        %480 = vmatmul.bf16.gmra.mxu0 %v325
        %v481 = vpop.f32.mrf.mxu0
        %v482 = vadd.f32 0.0, %v481
        %v483 = vpop.f32.mrf.mxu0
        %v484 = vadd.f32 0.0, %v483
        %485 = vmatmul.bf16.gmra.mxu0 %v328
        %v486 = vpop.f32.mrf.mxu0
        %v487 = vadd.f32 0.0, %v486
        %v488 = vpop.f32.mrf.mxu0
        %v489 = vadd.f32 0.0, %v488
        %490 = vmatmul.bf16.gmra.mxu0 %v331
        %v491 = vpop.f32.mrf.mxu0
        %v492 = vadd.f32 0.0, %v491
        %v493 = vpop.f32.mrf.mxu0
        %v494 = vadd.f32 0.0, %v493
        %495 = vmatmul.bf16.gmra.mxu0 %v334
        %v496 = vpop.f32.mrf.mxu0
        %v497 = vadd.f32 0.0, %v496
        %v498 = vpop.f32.mrf.mxu0
        %v499 = vadd.f32 0.0, %v498
        %500 = vmatmul.bf16.gmra.mxu0 %v337
        %v501 = vpop.f32.mrf.mxu0
        %v502 = vadd.f32 0.0, %v501
        %v503 = vpop.f32.mrf.mxu0
        %v504 = vadd.f32 0.0, %v503
        %505 = vmatmul.bf16.gmra.mxu0 %v340
        %v506 = vpop.f32.mrf.mxu0
        %v507 = vadd.f32 0.0, %v506
        %v508 = vpop.f32.mrf.mxu0
        %v509 = vadd.f32 0.0, %v508
        %510 = vmatmul.bf16.gmra.mxu0 %v343
        %v511 = vpop.f32.mrf.mxu0
        %v512 = vadd.f32 0.0, %v511
        %v513 = vpop.f32.mrf.mxu0
        %v514 = vadd.f32 0.0, %v513
        %515 = vmatmul.bf16.gmra.mxu0 %v346
        %v516 = vpop.f32.mrf.mxu0
        %v517 = vadd.f32 0.0, %v516
        %v518 = vpop.f32.mrf.mxu0
        %v519 = vadd.f32 0.0, %v518
        %520 = vmatmul.bf16.gmra.mxu0 %v349
        %v521 = vpop.f32.mrf.mxu0
        %v522 = vadd.f32 0.0, %v521
        %v523 = vpop.f32.mrf.mxu0
        %v524 = vadd.f32 0.0, %v523
        %525 = vmatmul.bf16.gmra.mxu0 %v352
        %v526 = vpop.f32.mrf.mxu0
        %v527 = vadd.f32 0.0, %v526
        %v528 = vpop.f32.mrf.mxu0
        %v529 = vadd.f32 0.0, %v528
        %530 = vmatmul.bf16.gmra.mxu0 %v355
        %v531 = vpop.f32.mrf.mxu0
        %v532 = vadd.f32 0.0, %v531
        %v533 = vpop.f32.mrf.mxu0
        %v534 = vadd.f32 0.0, %v533
        %535 = vmatmul.bf16.gmra.mxu0 %v358
        %v536 = vpop.f32.mrf.mxu0
        %v537 = vadd.f32 0.0, %v536
        %v538 = vpop.f32.mrf.mxu0
        %v539 = vadd.f32 0.0, %v538
        %540 = vmatmul.bf16.gmra.mxu0 %v361
        %v541 = vpop.f32.mrf.mxu0
        %v542 = vadd.f32 0.0, %v541
        %v543 = vpop.f32.mrf.mxu0
        %v544 = vadd.f32 0.0, %v543
        %545 = vdwg.mxu0
        %v546 = vmax.f32 %v378, %v467
        %547 = vmax.xlane.f32.xlu0 %v546
        %v548 = vpop.xlane.xlu0 %547
        %v549 = vmax.f32 %v380, %v469
        %550 = vmax.xlane.f32.xlu0 %v549
        %v551 = vpop.xlane.xlu0 %550
        %v552 = vmax.f32 %v383, %v472
        %553 = vmax.xlane.f32.xlu0 %v552
        %v554 = vpop.xlane.xlu0 %553
        %v555 = vmax.f32 %v385, %v474
        %556 = vmax.xlane.f32.xlu0 %v555
        %v557 = vpop.xlane.xlu0 %556
        %v558 = vmax.f32 %v388, %v477
        %559 = vmax.xlane.f32.xlu0 %v558
        %v560 = vpop.xlane.xlu0 %559
        %v561 = vmax.f32 %v390, %v479
        %562 = vmax.xlane.f32.xlu0 %v561
        %v563 = vpop.xlane.xlu0 %562
        %v564 = vmax.f32 %v393, %v482
        %565 = vmax.xlane.f32.xlu0 %v564
        %v566 = vpop.xlane.xlu0 %565
        %v567 = vmax.f32 %v395, %v484
        %568 = vmax.xlane.f32.xlu0 %v567
        %v569 = vpop.xlane.xlu0 %568
        %v570 = vmax.f32 %v398, %v487
        %571 = vmax.xlane.f32.xlu0 %v570
        %v572 = vpop.xlane.xlu0 %571
        %v573 = vmax.f32 %v400, %v489
        %574 = vmax.xlane.f32.xlu0 %v573
        %v575 = vpop.xlane.xlu0 %574
        %v576 = vmax.f32 %v403, %v492
        %577 = vmax.xlane.f32.xlu0 %v576
        %v578 = vpop.xlane.xlu0 %577
        %v579 = vmax.f32 %v405, %v494
        %580 = vmax.xlane.f32.xlu0 %v579
        %v581 = vpop.xlane.xlu0 %580
        %v582 = vmax.f32 %v408, %v497
        %583 = vmax.xlane.f32.xlu0 %v582
        %v584 = vpop.xlane.xlu0 %583
        %v585 = vmax.f32 %v410, %v499
        %586 = vmax.xlane.f32.xlu0 %v585
        %v587 = vpop.xlane.xlu0 %586
        %v588 = vmax.f32 %v413, %v502
        %589 = vmax.xlane.f32.xlu0 %v588
        %v590 = vpop.xlane.xlu0 %589
        %v591 = vmax.f32 %v415, %v504
        %592 = vmax.xlane.f32.xlu0 %v591
        %v593 = vpop.xlane.xlu0 %592
        %v594 = vmax.f32 %v418, %v507
        %595 = vmax.xlane.f32.xlu0 %v594
        %v596 = vpop.xlane.xlu0 %595
        %v597 = vmax.f32 %v420, %v509
        %598 = vmax.xlane.f32.xlu0 %v597
        %v599 = vpop.xlane.xlu0 %598
        %v600 = vmax.f32 %v423, %v512
        %601 = vmax.xlane.f32.xlu0 %v600
        %v602 = vpop.xlane.xlu0 %601
        %v603 = vmax.f32 %v425, %v514
        %604 = vmax.xlane.f32.xlu0 %v603
        %v605 = vpop.xlane.xlu0 %604
        %v606 = vmax.f32 %v428, %v517
        %607 = vmax.xlane.f32.xlu0 %v606
        %v608 = vpop.xlane.xlu0 %607
        %v609 = vmax.f32 %v430, %v519
        %610 = vmax.xlane.f32.xlu0 %v609
        %v611 = vpop.xlane.xlu0 %610
        %v612 = vmax.f32 %v433, %v522
        %613 = vmax.xlane.f32.xlu0 %v612
        %v614 = vpop.xlane.xlu0 %613
        %v615 = vmax.f32 %v435, %v524
        %616 = vmax.xlane.f32.xlu0 %v615
        %v617 = vpop.xlane.xlu0 %616
        %v618 = vmax.f32 %v438, %v527
        %619 = vmax.xlane.f32.xlu0 %v618
        %v620 = vpop.xlane.xlu0 %619
        %v621 = vmax.f32 %v440, %v529
        %622 = vmax.xlane.f32.xlu0 %v621
        %v623 = vpop.xlane.xlu0 %622
        %v624 = vmax.f32 %v443, %v532
        %625 = vmax.xlane.f32.xlu0 %v624
        %v626 = vpop.xlane.xlu0 %625
        %v627 = vmax.f32 %v445, %v534
        %628 = vmax.xlane.f32.xlu0 %v627
        %v629 = vpop.xlane.xlu0 %628
        %v630 = vmax.f32 %v448, %v537
        %631 = vmax.xlane.f32.xlu0 %v630
        %v632 = vpop.xlane.xlu0 %631
        %v633 = vmax.f32 %v450, %v539
        %634 = vmax.xlane.f32.xlu0 %v633
        %v635 = vpop.xlane.xlu0 %634
        %v636 = vmax.f32 %v453, %v542
        %637 = vmax.xlane.f32.xlu0 %v636
        %v638 = vpop.xlane.xlu0 %637
        %v639 = vmax.f32 %v455, %v544
        %640 = vmax.xlane.f32.xlu0 %v639
        %v641 = vpop.xlane.xlu0 %640
        %v642 = vsub.f32 %v378, %v548
        %v643 = vsub.f32 %v467, %v548
        %v644 = vsub.f32 %v380, %v551
        %v645 = vsub.f32 %v469, %v551
        %v646 = vsub.f32 %v383, %v554
        %v647 = vsub.f32 %v472, %v554
        %v648 = vsub.f32 %v385, %v557
        %v649 = vsub.f32 %v474, %v557
        %v650 = vsub.f32 %v388, %v560
        %v651 = vsub.f32 %v477, %v560
        %v652 = vsub.f32 %v390, %v563
        %v653 = vsub.f32 %v479, %v563
        %v654 = vsub.f32 %v393, %v566
        %v655 = vsub.f32 %v482, %v566
        %v656 = vsub.f32 %v395, %v569
        %v657 = vsub.f32 %v484, %v569
        %v658 = vsub.f32 %v398, %v572
        %v659 = vsub.f32 %v487, %v572
        %v660 = vsub.f32 %v400, %v575
        %v661 = vsub.f32 %v489, %v575
        %v662 = vsub.f32 %v403, %v578
        %v663 = vsub.f32 %v492, %v578
        %v664 = vsub.f32 %v405, %v581
        %v665 = vsub.f32 %v494, %v581
        %v666 = vsub.f32 %v408, %v584
        %v667 = vsub.f32 %v497, %v584
        %v668 = vsub.f32 %v410, %v587
        %v669 = vsub.f32 %v499, %v587
        %v670 = vsub.f32 %v413, %v590
        %v671 = vsub.f32 %v502, %v590
        %v672 = vsub.f32 %v415, %v593
        %v673 = vsub.f32 %v504, %v593
        %v674 = vsub.f32 %v418, %v596
        %v675 = vsub.f32 %v507, %v596
        %v676 = vsub.f32 %v420, %v599
        %v677 = vsub.f32 %v509, %v599
        %v678 = vsub.f32 %v423, %v602
        %v679 = vsub.f32 %v512, %v602
        %v680 = vsub.f32 %v425, %v605
        %v681 = vsub.f32 %v514, %v605
        %v682 = vsub.f32 %v428, %v608
        %v683 = vsub.f32 %v517, %v608
        %v684 = vsub.f32 %v430, %v611
        %v685 = vsub.f32 %v519, %v611
        %v686 = vsub.f32 %v433, %v614
        %v687 = vsub.f32 %v522, %v614
        %v688 = vsub.f32 %v435, %v617
        %v689 = vsub.f32 %v524, %v617
        %v690 = vsub.f32 %v438, %v620
        %v691 = vsub.f32 %v527, %v620
        %v692 = vsub.f32 %v440, %v623
        %v693 = vsub.f32 %v529, %v623
        %v694 = vsub.f32 %v443, %v626
        %v695 = vsub.f32 %v532, %v626
        %v696 = vsub.f32 %v445, %v629
        %v697 = vsub.f32 %v534, %v629
        %v698 = vsub.f32 %v448, %v632
        %v699 = vsub.f32 %v537, %v632
        %v700 = vsub.f32 %v450, %v635
        %v701 = vsub.f32 %v539, %v635
        %v702 = vsub.f32 %v453, %v638
        %v703 = vsub.f32 %v542, %v638
        %v704 = vsub.f32 %v455, %v641
        %v705 = vsub.f32 %v544, %v641
        %v706 = vmul.f32 %v642, 1.442695
        %v707 = vpow.pop %v706
        %v708 = vmul.f32 %v643, 1.442695
        %v709 = vpow.pop %v708
        %v710 = vmul.f32 %v644, 1.442695
        %v711 = vpow.pop %v710
        %v712 = vmul.f32 %v645, 1.442695
        %v713 = vpow.pop %v712
        %v714 = vmul.f32 %v646, 1.442695
        %v715 = vpow.pop %v714
        %v716 = vmul.f32 %v647, 1.442695
        %v717 = vpow.pop %v716
        %v718 = vmul.f32 %v648, 1.442695
        %v719 = vpow.pop %v718
        %v720 = vmul.f32 %v649, 1.442695
        %v721 = vpow.pop %v720
        %v722 = vmul.f32 %v650, 1.442695
        %v723 = vpow.pop %v722
        %v724 = vmul.f32 %v651, 1.442695
        %v725 = vpow.pop %v724
        %v726 = vmul.f32 %v652, 1.442695
        %v727 = vpow.pop %v726
        %v728 = vmul.f32 %v653, 1.442695
        %v729 = vpow.pop %v728
        %v730 = vmul.f32 %v654, 1.442695
        %v731 = vpow.pop %v730
        %v732 = vmul.f32 %v655, 1.442695
        %v733 = vpow.pop %v732
        %v734 = vmul.f32 %v656, 1.442695
        %v735 = vpow.pop %v734
        %v736 = vmul.f32 %v657, 1.442695
        %v737 = vpow.pop %v736
        %v738 = vmul.f32 %v658, 1.442695
        %v739 = vpow.pop %v738
        %v740 = vmul.f32 %v659, 1.442695
        %v741 = vpow.pop %v740
        %v742 = vmul.f32 %v660, 1.442695
        %v743 = vpow.pop %v742
        %v744 = vmul.f32 %v661, 1.442695
        %v745 = vpow.pop %v744
        %v746 = vmul.f32 %v662, 1.442695
        %v747 = vpow.pop %v746
        %v748 = vmul.f32 %v663, 1.442695
        %v749 = vpow.pop %v748
        %v750 = vmul.f32 %v664, 1.442695
        %v751 = vpow.pop %v750
        %v752 = vmul.f32 %v665, 1.442695
        %v753 = vpow.pop %v752
        %v754 = vmul.f32 %v666, 1.442695
        %v755 = vpow.pop %v754
        %v756 = vmul.f32 %v667, 1.442695
        %v757 = vpow.pop %v756
        %v758 = vmul.f32 %v668, 1.442695
        %v759 = vpow.pop %v758
        %v760 = vmul.f32 %v669, 1.442695
        %v761 = vpow.pop %v760
        %v762 = vmul.f32 %v670, 1.442695
        %v763 = vpow.pop %v762
        %v764 = vmul.f32 %v671, 1.442695
        %v765 = vpow.pop %v764
        %v766 = vmul.f32 %v672, 1.442695
        %v767 = vpow.pop %v766
        %v768 = vmul.f32 %v673, 1.442695
        %v769 = vpow.pop %v768
        %v770 = vmul.f32 %v674, 1.442695
        %v771 = vpow.pop %v770
        %v772 = vmul.f32 %v675, 1.442695
        %v773 = vpow.pop %v772
        %v774 = vmul.f32 %v676, 1.442695
        %v775 = vpow.pop %v774
        %v776 = vmul.f32 %v677, 1.442695
        %v777 = vpow.pop %v776
        %v778 = vmul.f32 %v678, 1.442695
        %v779 = vpow.pop %v778
        %v780 = vmul.f32 %v679, 1.442695
        %v781 = vpow.pop %v780
        %v782 = vmul.f32 %v680, 1.442695
        %v783 = vpow.pop %v782
        %v784 = vmul.f32 %v681, 1.442695
        %v785 = vpow.pop %v784
        %v786 = vmul.f32 %v682, 1.442695
        %v787 = vpow.pop %v786
        %v788 = vmul.f32 %v683, 1.442695
        %v789 = vpow.pop %v788
        %v790 = vmul.f32 %v684, 1.442695
        %v791 = vpow.pop %v790
        %v792 = vmul.f32 %v685, 1.442695
        %v793 = vpow.pop %v792
        %v794 = vmul.f32 %v686, 1.442695
        %v795 = vpow.pop %v794
        %v796 = vmul.f32 %v687, 1.442695
        %v797 = vpow.pop %v796
        %v798 = vmul.f32 %v688, 1.442695
        %v799 = vpow.pop %v798
        %v800 = vmul.f32 %v689, 1.442695
        %v801 = vpow.pop %v800
        %v802 = vmul.f32 %v690, 1.442695
        %v803 = vpow.pop %v802
        %v804 = vmul.f32 %v691, 1.442695
        %v805 = vpow.pop %v804
        %v806 = vmul.f32 %v692, 1.442695
        %v807 = vpow.pop %v806
        %v808 = vmul.f32 %v693, 1.442695
        %v809 = vpow.pop %v808
        %v810 = vmul.f32 %v694, 1.442695
        %v811 = vpow.pop %v810
        %v812 = vmul.f32 %v695, 1.442695
        %v813 = vpow.pop %v812
        %v814 = vmul.f32 %v696, 1.442695
        %v815 = vpow.pop %v814
        %v816 = vmul.f32 %v697, 1.442695
        %v817 = vpow.pop %v816
        %v818 = vmul.f32 %v698, 1.442695
        %v819 = vpow.pop %v818
        %v820 = vmul.f32 %v699, 1.442695
        %v821 = vpow.pop %v820
        %v822 = vmul.f32 %v700, 1.442695
        %v823 = vpow.pop %v822
        %v824 = vmul.f32 %v701, 1.442695
        %v825 = vpow.pop %v824
        %v826 = vmul.f32 %v702, 1.442695
        %v827 = vpow.pop %v826
        %v828 = vmul.f32 %v703, 1.442695
        %v829 = vpow.pop %v828
        %v830 = vmul.f32 %v704, 1.442695
        %v831 = vpow.pop %v830
        %v832 = vmul.f32 %v705, 1.442695
        %v833 = vpow.pop %v832
        %v834 = vadd.f32 %v707, %v709
        %835 = vadd.xlane.f32.xlu0 %v834
        %v836 = vpop.xlane.xlu0 %835
        %v837 = vadd.f32 %v711, %v713
        %838 = vadd.xlane.f32.xlu0 %v837
        %v839 = vpop.xlane.xlu0 %838
        %v840 = vadd.f32 %v715, %v717
        %841 = vadd.xlane.f32.xlu0 %v840
        %v842 = vpop.xlane.xlu0 %841
        %v843 = vadd.f32 %v719, %v721
        %844 = vadd.xlane.f32.xlu0 %v843
        %v845 = vpop.xlane.xlu0 %844
        %v846 = vadd.f32 %v723, %v725
        %847 = vadd.xlane.f32.xlu0 %v846
        %v848 = vpop.xlane.xlu0 %847
        %v849 = vadd.f32 %v727, %v729
        %850 = vadd.xlane.f32.xlu0 %v849
        %v851 = vpop.xlane.xlu0 %850
        %v852 = vadd.f32 %v731, %v733
        %853 = vadd.xlane.f32.xlu0 %v852
        %v854 = vpop.xlane.xlu0 %853
        %v855 = vadd.f32 %v735, %v737
        %856 = vadd.xlane.f32.xlu0 %v855
        %v857 = vpop.xlane.xlu0 %856
        %v858 = vadd.f32 %v739, %v741
        %859 = vadd.xlane.f32.xlu0 %v858
        %v860 = vpop.xlane.xlu0 %859
        %v861 = vadd.f32 %v743, %v745
        %862 = vadd.xlane.f32.xlu0 %v861
        %v863 = vpop.xlane.xlu0 %862
        %v864 = vadd.f32 %v747, %v749
        %865 = vadd.xlane.f32.xlu0 %v864
        %v866 = vpop.xlane.xlu0 %865
        %v867 = vadd.f32 %v751, %v753
        %868 = vadd.xlane.f32.xlu0 %v867
        %v869 = vpop.xlane.xlu0 %868
        %v870 = vadd.f32 %v755, %v757
        %871 = vadd.xlane.f32.xlu0 %v870
        %v872 = vpop.xlane.xlu0 %871
        %v873 = vadd.f32 %v759, %v761
        %874 = vadd.xlane.f32.xlu0 %v873
        %v875 = vpop.xlane.xlu0 %874
        %v876 = vadd.f32 %v763, %v765
        %877 = vadd.xlane.f32.xlu0 %v876
        %v878 = vpop.xlane.xlu0 %877
        %v879 = vadd.f32 %v767, %v769
        %880 = vadd.xlane.f32.xlu0 %v879
        %v881 = vpop.xlane.xlu0 %880
        %v882 = vadd.f32 %v771, %v773
        %883 = vadd.xlane.f32.xlu0 %v882
        %v884 = vpop.xlane.xlu0 %883
        %v885 = vadd.f32 %v775, %v777
        %886 = vadd.xlane.f32.xlu0 %v885
        %v887 = vpop.xlane.xlu0 %886
        %v888 = vadd.f32 %v779, %v781
        %889 = vadd.xlane.f32.xlu0 %v888
        %v890 = vpop.xlane.xlu0 %889
        %v891 = vadd.f32 %v783, %v785
        %892 = vadd.xlane.f32.xlu0 %v891
        %v893 = vpop.xlane.xlu0 %892
        %v894 = vadd.f32 %v787, %v789
        %895 = vadd.xlane.f32.xlu0 %v894
        %v896 = vpop.xlane.xlu0 %895
        %v897 = vadd.f32 %v791, %v793
        %898 = vadd.xlane.f32.xlu0 %v897
        %v899 = vpop.xlane.xlu0 %898
        %v900 = vadd.f32 %v795, %v797
        %901 = vadd.xlane.f32.xlu0 %v900
        %v902 = vpop.xlane.xlu0 %901
        %v903 = vadd.f32 %v799, %v801
        %904 = vadd.xlane.f32.xlu0 %v903
        %v905 = vpop.xlane.xlu0 %904
        %v906 = vadd.f32 %v803, %v805
        %907 = vadd.xlane.f32.xlu0 %v906
        %v908 = vpop.xlane.xlu0 %907
        %v909 = vadd.f32 %v807, %v809
        %910 = vadd.xlane.f32.xlu0 %v909
        %v911 = vpop.xlane.xlu0 %910
        %v912 = vadd.f32 %v811, %v813
        %913 = vadd.xlane.f32.xlu0 %v912
        %v914 = vpop.xlane.xlu0 %913
        %v915 = vadd.f32 %v815, %v817
        %916 = vadd.xlane.f32.xlu0 %v915
        %v917 = vpop.xlane.xlu0 %916
        %v918 = vadd.f32 %v819, %v821
        %919 = vadd.xlane.f32.xlu0 %v918
        %v920 = vpop.xlane.xlu0 %919
        %v921 = vadd.f32 %v823, %v825
        %922 = vadd.xlane.f32.xlu0 %v921
        %v923 = vpop.xlane.xlu0 %922
        %v924 = vadd.f32 %v827, %v829
        %925 = vadd.xlane.f32.xlu0 %v924
        %v926 = vpop.xlane.xlu0 %925
        %v927 = vadd.f32 %v831, %v833
        %928 = vadd.xlane.f32.xlu0 %v927
        %v929 = vpop.xlane.xlu0 %928
        %v930 = vrcp.pop %v836
        %v931 = vrcp.pop %v839
        %v932 = vrcp.pop %v842
        %v933 = vrcp.pop %v845
        %v934 = vrcp.pop %v848
        %v935 = vrcp.pop %v851
        %v936 = vrcp.pop %v854
        %v937 = vrcp.pop %v857
        %v938 = vrcp.pop %v860
        %v939 = vrcp.pop %v863
        %v940 = vrcp.pop %v866
        %v941 = vrcp.pop %v869
        %v942 = vrcp.pop %v872
        %v943 = vrcp.pop %v875
        %v944 = vrcp.pop %v878
        %v945 = vrcp.pop %v881
        %v946 = vrcp.pop %v884
        %v947 = vrcp.pop %v887
        %v948 = vrcp.pop %v890
        %v949 = vrcp.pop %v893
        %v950 = vrcp.pop %v896
        %v951 = vrcp.pop %v899
        %v952 = vrcp.pop %v902
        %v953 = vrcp.pop %v905
        %v954 = vrcp.pop %v908
        %v955 = vrcp.pop %v911
        %v956 = vrcp.pop %v914
        %v957 = vrcp.pop %v917
        %v958 = vrcp.pop %v920
        %v959 = vrcp.pop %v923
        %v960 = vrcp.pop %v926
        %v961 = vrcp.pop %v929
        %v962 = vmul.f32 %v707, %v930
        %v963 = vmul.f32 %v709, %v930
        %v964 = vmul.f32 %v711, %v931
        %v965 = vmul.f32 %v713, %v931
        %v966 = vmul.f32 %v715, %v932
        %v967 = vmul.f32 %v717, %v932
        %v968 = vmul.f32 %v719, %v933
        %v969 = vmul.f32 %v721, %v933
        %v970 = vmul.f32 %v723, %v934
        %v971 = vmul.f32 %v725, %v934
        %v972 = vmul.f32 %v727, %v935
        %v973 = vmul.f32 %v729, %v935
        %v974 = vmul.f32 %v731, %v936
        %v975 = vmul.f32 %v733, %v936
        %v976 = vmul.f32 %v735, %v937
        %v977 = vmul.f32 %v737, %v937
        %v978 = vmul.f32 %v739, %v938
        %v979 = vmul.f32 %v741, %v938
        %v980 = vmul.f32 %v743, %v939
        %v981 = vmul.f32 %v745, %v939
        %v982 = vmul.f32 %v747, %v940
        %v983 = vmul.f32 %v749, %v940
        %v984 = vmul.f32 %v751, %v941
        %v985 = vmul.f32 %v753, %v941
        %v986 = vmul.f32 %v755, %v942
        %v987 = vmul.f32 %v757, %v942
        %v988 = vmul.f32 %v759, %v943
        %v989 = vmul.f32 %v761, %v943
        %v990 = vmul.f32 %v763, %v944
        %v991 = vmul.f32 %v765, %v944
        %v992 = vmul.f32 %v767, %v945
        %v993 = vmul.f32 %v769, %v945
        %v994 = vmul.f32 %v771, %v946
        %v995 = vmul.f32 %v773, %v946
        %v996 = vmul.f32 %v775, %v947
        %v997 = vmul.f32 %v777, %v947
        %v998 = vmul.f32 %v779, %v948
        %v999 = vmul.f32 %v781, %v948
        %v1000 = vmul.f32 %v783, %v949
        %v1001 = vmul.f32 %v785, %v949
        %v1002 = vmul.f32 %v787, %v950
        %v1003 = vmul.f32 %v789, %v950
        %v1004 = vmul.f32 %v791, %v951
        %v1005 = vmul.f32 %v793, %v951
        %v1006 = vmul.f32 %v795, %v952
        %v1007 = vmul.f32 %v797, %v952
        %v1008 = vmul.f32 %v799, %v953
        %v1009 = vmul.f32 %v801, %v953
        %v1010 = vmul.f32 %v803, %v954
        %v1011 = vmul.f32 %v805, %v954
        %v1012 = vmul.f32 %v807, %v955
        %v1013 = vmul.f32 %v809, %v955
        %v1014 = vmul.f32 %v811, %v956
        %v1015 = vmul.f32 %v813, %v956
        %v1016 = vmul.f32 %v815, %v957
        %v1017 = vmul.f32 %v817, %v957
        %v1018 = vmul.f32 %v819, %v958
        %v1019 = vmul.f32 %v821, %v958
        %v1020 = vmul.f32 %v823, %v959
        %v1021 = vmul.f32 %v825, %v959
        %v1022 = vmul.f32 %v827, %v960
        %v1023 = vmul.f32 %v829, %v960
        %v1024 = vmul.f32 %v831, %v961
        %v1025 = vmul.f32 %v833, %v961
        %v1026 = vpack.c.bf16 %v964, %v962
        %v1027 = vpack.c.bf16 %v965, %v963
        %v1028 = vpack.c.bf16 %v968, %v966
        %v1029 = vpack.c.bf16 %v969, %v967
        %v1030 = vpack.c.bf16 %v972, %v970
        %v1031 = vpack.c.bf16 %v973, %v971
        %v1032 = vpack.c.bf16 %v976, %v974
        %v1033 = vpack.c.bf16 %v977, %v975
        %v1034 = vpack.c.bf16 %v980, %v978
        %v1035 = vpack.c.bf16 %v981, %v979
        %v1036 = vpack.c.bf16 %v984, %v982
        %v1037 = vpack.c.bf16 %v985, %v983
        %v1038 = vpack.c.bf16 %v988, %v986
        %v1039 = vpack.c.bf16 %v989, %v987
        %v1040 = vpack.c.bf16 %v992, %v990
        %v1041 = vpack.c.bf16 %v993, %v991
        %v1042 = vpack.c.bf16 %v996, %v994
        %v1043 = vpack.c.bf16 %v997, %v995
        %v1044 = vpack.c.bf16 %v1000, %v998
        %v1045 = vpack.c.bf16 %v1001, %v999
        %v1046 = vpack.c.bf16 %v1004, %v1002
        %v1047 = vpack.c.bf16 %v1005, %v1003
        %v1048 = vpack.c.bf16 %v1008, %v1006
        %v1049 = vpack.c.bf16 %v1009, %v1007
        %v1050 = vpack.c.bf16 %v1012, %v1010
        %v1051 = vpack.c.bf16 %v1013, %v1011
        %v1052 = vpack.c.bf16 %v1016, %v1014
        %v1053 = vpack.c.bf16 %v1017, %v1015
        %v1054 = vpack.c.bf16 %v1020, %v1018
        %v1055 = vpack.c.bf16 %v1021, %v1019
        %v1056 = vpack.c.bf16 %v1024, %v1022
        %v1057 = vpack.c.bf16 %v1025, %v1023
        %1059 = vst [vmem:[#allocation1] ss:$9 sm:$0xff] %v278
        %v1060 = vld [vmem:[#allocation1] sm:$0xff]
        %v1061 = vld [vmem:[#allocation1 + $0x9] sm:$0xff]
        %1064 = vmatpush.bf16.msra.mxu0 %v1040
        %1065 = vmatpush.bf16.msra.mxu0 %v1038
        %1066 = vmatpush.bf16.msra.mxu0 %v1036
        %1067 = vmatpush.bf16.msra.mxu0 %v1034
        %1068 = vmatpush.bf16.msra.mxu0 %v1032
        %1069 = vmatpush.bf16.msra.mxu0 %v1030
        %1070 = vmatpush.bf16.msra.mxu0 %v1028
        %1071 = vmatpush.bf16.msra.mxu0 %v1026
        %1072 = vmatmul.bf16.gmra.mxu0 %v1060
        %v1073 = vpop.f32.mrf.mxu0
        %v1074 = vadd.f32 0.0, %v1073
        %v1075 = vpop.f32.mrf.mxu0
        %1076 = vdwg.mxu0
        %1077 = vmatpush.bf16.msra.mxu0 %v1056
        %1078 = vmatpush.bf16.msra.mxu0 %v1054
        %1079 = vmatpush.bf16.msra.mxu0 %v1052
        %1080 = vmatpush.bf16.msra.mxu0 %v1050
        %1081 = vmatpush.bf16.msra.mxu0 %v1048
        %1082 = vmatpush.bf16.msra.mxu0 %v1046
        %1083 = vmatpush.bf16.msra.mxu0 %v1044
        %1084 = vmatpush.bf16.msra.mxu0 %v1042
        %1085 = vmatmul.bf16.gmra.mxu0 %v1061
        %v1086 = vpop.f32.mrf.mxu0
        %v1087 = vadd.f32 %v1074, %v1086
        %v1088 = vpop.f32.mrf.mxu0
        %1089 = vdwg.mxu0
        %1090 = vmatpush.bf16.msra.mxu0 %v1041
        %1091 = vmatpush.bf16.msra.mxu0 %v1039
        %1092 = vmatpush.bf16.msra.mxu0 %v1037
        %1093 = vmatpush.bf16.msra.mxu0 %v1035
        %1094 = vmatpush.bf16.msra.mxu0 %v1033
        %1095 = vmatpush.bf16.msra.mxu0 %v1031
        %1096 = vmatpush.bf16.msra.mxu0 %v1029
        %1097 = vmatpush.bf16.msra.mxu0 %v1027
        %1098 = vmatmul.bf16.gmra.mxu0 %v1060
        %v1099 = vpop.f32.mrf.mxu0
        %v1100 = vadd.f32 0.0, %v1099
        %v1101 = vpop.f32.mrf.mxu0
        %1102 = vdwg.mxu0
        %1103 = vmatpush.bf16.msra.mxu0 %v1057
        %1104 = vmatpush.bf16.msra.mxu0 %v1055
        %1105 = vmatpush.bf16.msra.mxu0 %v1053
        %1106 = vmatpush.bf16.msra.mxu0 %v1051
        %1107 = vmatpush.bf16.msra.mxu0 %v1049
        %1108 = vmatpush.bf16.msra.mxu0 %v1047
        %1109 = vmatpush.bf16.msra.mxu0 %v1045
        %1110 = vmatpush.bf16.msra.mxu0 %v1043
        %1111 = vmatmul.bf16.gmra.mxu0 %v1061
        %v1112 = vpop.f32.mrf.mxu0
        %v1113 = vadd.f32 %v1100, %v1112
        %v1114 = vpop.f32.mrf.mxu0
        %1115 = vdwg.mxu0
        // Predicated region
        $region41: #{tpu_custom_call.1} parent=31 // pred_check
          %p1116 = pneg %p202
        $region42: #{tpu_custom_call.1} parent=31 // pred_check_branch
          %1118 = sbr.rel (%p1116) target = $region44
        $region43: #{tpu_custom_call.1} parent=31 // pred_region
          %v1121 = vrot.slane %v1113, 6
          %vm1122 = vcmask 1041408
          %v1123 = vsel %vm1122, %v1087, %v1121
          %1125 = vst [vmem:[#allocation5] sm:$0xf] %v1123
        $region44: #{tpu_custom_call.1} parent=31 // pred_fallthru
          _
        %p1126 = scmp.gt.s32.totalorder %s25, 0
        // Predicated region
        $region45: #{tpu_custom_call.1} parent=31 // pred_check
          %p1127 = pneg %p1126
        $region46: #{tpu_custom_call.1} parent=31 // pred_check_branch
          %1129 = sbr.rel (%p1127) target = $region48
        $region47: #{tpu_custom_call.1} parent=31 // pred_region
          %v1130 = vld [vmem:[#allocation5] sm:$0xf]
          %v1133 = vrot.slane %v1113, 6
          %vm1134 = vcmask 1041408
          %v1135 = vsel %vm1134, %v1087, %v1133
          %v1137 = vadd.f32 %v1130, %v1135
          %1138 = vst [vmem:[#allocation5] sm:$0xf] %v1137
        $region48: #{tpu_custom_call.1} parent=31 // pred_fallthru
          _
        // Predicated region
        $region49: #{tpu_custom_call.1} parent=31 // pred_check
          %p1139 = pneg %p202
        $region50: #{tpu_custom_call.1} parent=31 // pred_check_branch
          %1141 = sbr.rel (%p1139) target = $region52
        $region51: #{tpu_custom_call.1} parent=31 // pred_region
          %v1142 = vld [vmem:[%s2] sm:$0x3]
          %v1143 = vld [vmem:[#allocation5] sm:$0xf]
          %1145 = vst [vmem:[#allocation1] ss:$4 sm:$0xff] %v1143
          %v1146 = vld.sshfl [vmem:[#allocation1] sm:$0xff pattern:$0x73625140]
          %v1147 = vld.sshfl [vmem:[#allocation1 + $0x8] sm:$0xff pattern:$0x73625140]
          %v1150 = vpack.c.bf16 %v1146, %v1146
          %v1151 = vpack.c.bf16 %v1147, %v1147
          %v1152 = vld [vmem:[%s177] sm:$0xff]
          %1154 = vst [vmem:[#allocation1] ss:$2 sm:$0xff] %v1152
          %v1155 = vld.sshfl [vmem:[#allocation1] sm:$0xff pattern:$0x75316420]
          %v1156 = vld.sshfl [vmem:[#allocation1 + $0x8] sm:$0xff pattern:$0x75316420]
          %v1160 = vsel %vm314, %v1142, 0
          %v1163 = vsel %vm363, %v1150, 0
          %v1166 = vsel %vm363, %v1151, 0
          %1168 = vmatpush.bf16.msra.mxu0 0
          %1169 = vmatpush.bf16.msra.mxu0 0
          %1170 = vmatpush.bf16.msra.mxu0 0
          %1171 = vmatpush.bf16.msra.mxu0 0
          %1172 = vmatpush.bf16.msra.mxu0 0
          %1173 = vmatpush.bf16.msra.mxu0 0
          %1174 = vmatpush.bf16.msra.mxu0 0
          %1175 = vmatpush.bf16.msra.mxu0 %v1163
          %1176 = vmatmul.bf16.gmra.mxu0 %v1160
          %v1177 = vpop.f32.mrf.mxu0
          %v1178 = vadd.f32 %v1155, %v1177
          %v1179 = vpop.f32.mrf.mxu0
          %1180 = vdwg.mxu0
          %1181 = vmatpush.bf16.msra.mxu0 0
          %1182 = vmatpush.bf16.msra.mxu0 0
          %1183 = vmatpush.bf16.msra.mxu0 0
          %1184 = vmatpush.bf16.msra.mxu0 0
          %1185 = vmatpush.bf16.msra.mxu0 0
          %1186 = vmatpush.bf16.msra.mxu0 0
          %1187 = vmatpush.bf16.msra.mxu0 0
          %1188 = vmatpush.bf16.msra.mxu0 %v1166
          %1189 = vmatmul.bf16.gmra.mxu0 %v1160
          %v1190 = vpop.f32.mrf.mxu0
          %v1191 = vadd.f32 %v1156, %v1190
          %v1192 = vpop.f32.mrf.mxu0
          %1193 = vdwg.mxu0
          %v1196 = vrot.slane %v1191, 4
          %vm1197 = vcmask 1043456
          %v1198 = vsel %vm1197, %v1178, %v1196
          %1200 = vst [vmem:[%s200] sm:$0xff] %v1198
        $region52: #{tpu_custom_call.1} parent=31 // pred_fallthru
          _
        %s1201 = sand.u32 %s108, 1
        %s1202 = scalar_lea.sflag [#allocation8], %s1201
        %s1203 = sand.u32 %s108, 1
        %s1204 = smul.addr %s1203, 8
        %s1205 = scalar_lea.vmem [#allocation9], %s1204
        // Predicated region
        $region53: #{tpu_custom_call.1} parent=31 // pred_check
          %p1206 = pneg %p118
        $region54: #{tpu_custom_call.1} parent=31 // pred_check_branch
          %1208 = sbr.rel (%p1206) target = $region56
        $region55: #{tpu_custom_call.1} parent=31 // pred_region
          %1210 = vsyncadd %s1202, 0
          %s1211 = smul.addr %s24, 2
          %s1212 = smul.addr %s1211, 4
          %s1213 = scalar_lea.hbm %s3, %s1212
          %s1215 = sshll.u32 %s1205, 4
          %s1216 = int_to_ptr.vmem [resolvable:$true] %s1215
          %s1217 = sshll.u32 %s1213, 4
          %s1218 = int_to_ptr.hbm [resolvable:$true] %s1217
          %1220 = dma.vmem_to_hbm [thread:$0]  %s1216, 128, %s1218, %s1202
        $region56: #{tpu_custom_call.1} parent=31 // pred_fallthru
          _
      $region32: #{tpu_custom_call.1} parent=5 // pred_fallthru
        _
      %p1221 = scmp.le.s32.totalorder 2, %s15
      // Predicated region
      $region57: #{tpu_custom_call.1} parent=5 // pred_check
        %p1222 = pneg %p1221
      $region58: #{tpu_custom_call.1} parent=5 // pred_check_branch
        %1224 = sbr.rel (%p1222) target = $region60
      $region59: #{tpu_custom_call.1} parent=5 // pred_region
        %s1225 = ssub.s32 %s15, 2
        // Predicated region
        $region61: #{tpu_custom_call.1} parent=59 // pred_check
          %p1226 = pneg %p124
        $region62: #{tpu_custom_call.1} parent=59 // pred_check_branch
          %1228 = sbr.rel (%p1226) target = $region64
        $region63: #{tpu_custom_call.1} parent=59 // pred_region
          %s1229 = sand.u32 %s109, 1
          %s1230 = scalar_lea.sflag [#allocation8], %s1229
          %s1231 = sand.u32 %s109, 1
          %s1232 = smul.addr %s1231, 8
          %s1233 = scalar_lea.vmem [#allocation9], %s1232
          %1235 = dma.done %s1230, 128
        $region64: #{tpu_custom_call.1} parent=59 // pred_fallthru
          _
      $region60: #{tpu_custom_call.1} parent=5 // pred_fallthru
        _
    $region6: #{tpu_custom_call.1} parent=1 // loop_footer
      %s19 = sadd.s32 1, %s15
    $region7: #{tpu_custom_call.1} parent=1 // loop_footer_branch
      %14 = sbr.rel target = $region3
    $region8: #{tpu_custom_call.1} parent=1 // loop_exit
      _
    %1236 = vsyncpa [#allocation7], 1
    %s1237 = scalar_lea.sflag [#allocation7], 1
    %1238 = vsyncpa %s1237, 1
    %1239 = vsyncpa [#allocation8], 1
    %s1240 = scalar_lea.sflag [#allocation8], 1
    %1241 = vsyncpa %s1240, 1

</llo_original>
